<compile_context>
chip_gen: v7x
topology: tpu7x:2x2x1
jax: 0.10.0
libtpu: 0.0.40
codegen_flags: <defaults>
</compile_context>

<pallas_src>
import functools

import jax
import jax.numpy as jnp
import numpy as np
from jax.experimental import pallas as pl
from jax.experimental.pallas import tpu as pltpu

BN_EPS = 1e-5
LEAKY_SLOPE = 0.1


def _round_up(x, d):
    return ((x + d - 1) // d) * d


@functools.lru_cache(maxsize=1)
def _vmem_capacity():
    """Physical VMEM bytes per TensorCore (128 MiB v5e/v6e, 64 MiB v7x)."""
    try:
        info = pltpu.get_tpu_info()
        for attr in ("vmem_capacity_bytes", "vmem_size_bytes", "vmem_bytes"):
            v = getattr(info, attr, None)
            if v:
                return int(v)
    except Exception:
        pass
    return 64 * 1024 * 1024          # conservative (v7x) fallback


def _pick_tile_hw(hw, c_in, c4, x_bytes, out_bytes, vmem_cap):
    """Spatial (lane) tile size for both passes.

    Budget the double-buffered streamed tiles (x in + y out) at ~45% of
    physical VMEM minus the resident weight/bias footprint, so the same code
    sizes up on 128 MiB parts and stays safe on v7x's 64 MiB.
    """
    # Resident (constant-index) buffers: weight slab + bias, lane-padded,
    # conservatively assumed double-buffered.
    resident = 2 * c4 * max(c_in, 128) * x_bytes + 2 * c4 * 128 * 4
    budget = max(int(vmem_cap * 0.45) - resident, 2 * 1024 * 1024)
    per_col = 2 * (c_in * x_bytes + c4 * out_bytes)   # double-buffered bytes/col
    t = budget // max(per_col, 1)
    t = max(128, min(t, 1 << 16))
    t = min(t, _round_up(hw, 128))
    return _round_up(t, 128)


def _stats_kernel(x_ref, sum_ref, gram_ref, *, hw_total, tile_hw, n_hw_half,
                  needs_mask):
    """Pass 1: accumulate per-channel column sums (C_in,1) and Gram X X^T."""
    c = pl.program_id(0)          # TC split (parallel)
    b = pl.program_id(1)          # batch (arbitrary / reduction)
    t = pl.program_id(2)          # hw tile within this split (reduction)

    @pl.when((b == 0) & (t == 0))
    def _():
        sum_ref[...] = jnp.zeros_like(sum_ref)
        gram_ref[...] = jnp.zeros_like(gram_ref)

    x = x_ref[...].astype(jnp.float32)            # (C_in, T_hw), lane-dense

    def accumulate(xv):
        sum_ref[...] += jnp.sum(xv, axis=1, keepdims=True)
        # Gram = x @ x^T with T_hw as K: contraction on the last (lane) dim of
        # both operands -> no transpose/relayout of the large tile.
        gram_ref[...] += jax.lax.dot_general(
            xv, xv, (((1,), (1,)), ((), ())),
            preferred_element_type=jnp.float32)

    if needs_mask:
        # Only the globally-last hw tile can be partial: gate the mask there.
        is_last = ((c == pl.num_programs(0) - 1) &
                   (t == pl.num_programs(2) - 1))

        @pl.when(is_last)
        def _():
            lane = jax.lax.broadcasted_iota(jnp.int32, x.shape, 1)
            base = (c * n_hw_half + t) * tile_hw
            accumulate(jnp.where(base + lane < hw_total, x, 0.0))

        @pl.when(jnp.logical_not(is_last))
        def _():
            accumulate(x)
    else:
        accumulate(x)


def _apply_kernel(x_ref, w_ref, b_ref, o_ref):
    """Pass 2: y^T = W' @ x  (scale folded into W'), + bias, LeakyReLU.

    x_ref : (C_in, T_hw)   stream dtype
    w_ref : (4*C_out, C_in) stream dtype (BN scale pre-folded)
    b_ref : (4*C_out, 1)    f32
    o_ref : (4*C_out, T_hw) stream dtype -- lane-dense store
    """
    y = jnp.dot(w_ref[...], x_ref[...], preferred_element_type=jnp.float32)
    z = y + b_ref[...]
    o_ref[...] = jnp.where(z >= 0.0, z, LEAKY_SLOPE * z).astype(o_ref.dtype)


@jax.jit
def up_forward(x_nchw, weight, gamma, beta):
    """PyTorch-equivalent forward of `up`.

    x_nchw : (N, C_in, H, W)      f32 or bf16 (dtype sets the stream dtype)
    weight : (C_in, C_out, 2, 2)  ConvTranspose2d weight
    gamma  : (C_out,)             BatchNorm weight
    beta   : (C_out,)             BatchNorm bias
    returns: (N, C_out, 2H, 2W)   same dtype as x
    """
    n, c_in, h, w_sp = x_nchw.shape
    c_out = weight.shape[1]
    c4 = 4 * c_out
    hw = h * w_sp
    m = n * hw
    sdtype = x_nchw.dtype
    sbytes = jnp.dtype(sdtype).itemsize

    # Channel-major view of x: free reshape, no transpose copy.
    x3 = x_nchw.reshape(n, c_in, hw)

    # Fused weight slab, transposed: row r = (2*di + dj)*C_out + co.
    w2_f32 = jnp.transpose(weight.astype(jnp.float32),
                           (2, 3, 1, 0)).reshape(c4, c_in)

    vmem_cap = _vmem_capacity()
    t_hw = _pick_tile_hw(hw, c_in, c4, sbytes, sbytes, vmem_cap)
    n_hw_tiles = pl.cdiv(hw, t_hw)
    vmem_limit = min(int(vmem_cap * 0.75), 100 * 1024 * 1024)

    # ---------------- pass 1: batch statistics ------------------------------
    # Leading size-2 "parallel" axis -> both v7x TensorCores each reduce half
    # of the hw tiles into their own partial accumulators (combined in glue).
    n_split = 2 if (n_hw_tiles >= 2 and n_hw_tiles % 2 == 0) else 1
    n_hw_half = n_hw_tiles // n_split
    needs_mask = (hw % t_hw) != 0

    sums, grams = pl.pallas_call(
        functools.partial(_stats_kernel, hw_total=hw, tile_hw=t_hw,
                          n_hw_half=n_hw_half, needs_mask=needs_mask),
        out_shape=(jax.ShapeDtypeStruct((n_split, c_in, 1), jnp.float32),
                   jax.ShapeDtypeStruct((n_split, c_in, c_in), jnp.float32)),
        grid=(n_split, n, n_hw_half),
        in_specs=[pl.BlockSpec((None, c_in, t_hw),
                               lambda c, b, t: (b, 0, c * n_hw_half + t))],
        out_specs=(pl.BlockSpec((None, c_in, 1), lambda c, b, t: (c, 0, 0)),
                   pl.BlockSpec((None, c_in, c_in), lambda c, b, t: (c, 0, 0))),
        compiler_params=pltpu.CompilerParams(
            dimension_semantics=("parallel", "arbitrary", "arbitrary"),
            vmem_limit_bytes=vmem_limit),
    )(x3)

    # ---- tiny glue: fold stats through the weight -> per-row scale / bias ---
    s = jnp.sum(sums, axis=0).reshape(c_in)           # (C_in,)
    g = jnp.sum(grams, axis=0)                        # (C_in, C_in)

    cnt = jnp.float32(4 * m)
    row_sum = w2_f32 @ s                              # (4*C_out,)  sum_pos y_r
    row_ssq = jnp.sum((w2_f32 @ g) * w2_f32, axis=1)  # (4*C_out,)  sum_pos y_r^2
    mean = row_sum.reshape(4, c_out).sum(axis=0) / cnt
    ex2 = row_ssq.reshape(4, c_out).sum(axis=0) / cnt
    var = jnp.maximum(ex2 - mean * mean, 0.0)
    inv_std = jax.lax.rsqrt(var + BN_EPS)
    scale_c = gamma.astype(jnp.float32) * inv_std     # (C_out,)
    bias_c = beta.astype(jnp.float32) - mean * scale_c

    # Fold BN scale into the weight; bias stays a tiny f32 column vector.
    w_scaled = (w2_f32 * jnp.tile(scale_c, 4)[:, None]).astype(sdtype)
    bias_col = jnp.tile(bias_c, 4).reshape(c4, 1)     # f32

    # ---------------- pass 2: fused matmul + affine + LeakyReLU --------------
    out_t = pl.pallas_call(
        _apply_kernel,
        out_shape=jax.ShapeDtypeStruct((n, c4, hw), sdtype),
        grid=(n, n_hw_tiles),
        in_specs=[pl.BlockSpec((None, c_in, t_hw), lambda b, t: (b, 0, t)),
                  pl.BlockSpec((c4, c_in), lambda b, t: (0, 0)),
                  pl.BlockSpec((c4, 1), lambda b, t: (0, 0))],
        out_specs=pl.BlockSpec((None, c4, t_hw), lambda b, t: (b, 0, t)),
        compiler_params=pltpu.CompilerParams(
            dimension_semantics=("parallel", "parallel"),
            vmem_limit_bytes=vmem_limit),
    )(x3, w_scaled, bias_col)

    # ---- glue: single 6-D transpose to NCHW (the only output copy) ----------
    out6 = out_t.reshape(n, 2, 2, c_out, h, w_sp)       # (n, di, dj, co, i, j)
    out = jnp.transpose(out6, (0, 3, 4, 1, 5, 2))       # (n, co, i, di, j, dj)
    return out.reshape(n, c_out, 2 * h, 2 * w_sp)


def _reference(x_nchw, weight, gamma, beta):
    """Pure-JAX f32 reference: ConvTranspose2d(2,2,s=2) + BN(batch) + LeakyReLU."""
    n, c_in, h, w = x_nchw.shape
    c_out = weight.shape[1]
    x_nhwc = jnp.transpose(x_nchw, (0, 2, 3, 1))                  # (N,H,W,Cin)
    y = jnp.einsum("nhwc,cokl->nhkwlo", x_nhwc, weight)           # (N,H,2,W,2,Co)
    y = y.reshape(n, 2 * h, 2 * w, c_out)
    mean = jnp.mean(y, axis=(0, 1, 2))
    var = jnp.mean((y - mean) ** 2, axis=(0, 1, 2))
    z = (y - mean) * jax.lax.rsqrt(var + BN_EPS) * gamma + beta
    z = jnp.where(z >= 0, z, LEAKY_SLOPE * z)
    return jnp.transpose(z, (0, 3, 1, 2))


if __name__ == "__main__":
    # Small deterministic example consistent with the module: in_c=4, out_c=8.
    N, C_IN, C_OUT, H, W = 2, 4, 8, 16, 16

    key = jax.random.PRNGKey(0)
    kx, kw, kg, kb = jax.random.split(key, 4)

    x = jax.random.normal(kx, (N, C_IN, H, W), dtype=jnp.float32)
    # ConvTranspose2d weight shape in PyTorch: (in_c, out_c, kH, kW)
    weight = jax.random.normal(kw, (C_IN, C_OUT, 2, 2), dtype=jnp.float32) * 0.3
    gamma = 1.0 + 0.1 * jax.random.normal(kg, (C_OUT,), dtype=jnp.float32)
    beta = 0.1 * jax.random.normal(kb, (C_OUT,), dtype=jnp.float32)

    ref = jax.block_until_ready(_reference(x, weight, gamma, beta))

    # 1) f32 streams: exact-semantics check against the f32 reference.
    out_f32 = jax.block_until_ready(up_forward(x, weight, gamma, beta))
    assert out_f32.shape == (N, C_OUT, 2 * H, 2 * W)
    np.testing.assert_allclose(np.asarray(out_f32), np.asarray(ref),
                               rtol=2e-4, atol=2e-4)

    # 2) bf16 streams (the bandwidth-optimized path): x / weight slab / output
    #    in bf16, f32 MXU accumulation and f32 BN stats.
    out_bf16 = jax.block_until_ready(
        up_forward(x.astype(jnp.bfloat16), weight, gamma, beta))
    assert out_bf16.dtype == jnp.bfloat16
    np.testing.assert_allclose(np.asarray(out_bf16.astype(jnp.float32)),
                               np.asarray(ref), rtol=6e-2, atol=6e-2)

    print("KERNEL_OK")
</pallas_src>

<mosaic_0001>
module attributes {stable_mosaic.version = 11 : i64} {
  func.func @_stats_kernel(%arg0: i32, %arg1: i32, %arg2: i32, %arg3: memref<1x4x256xf32, #tpu.memory_space<vmem>>, %arg4: memref<1x4x1xf32, #tpu.memory_space<vmem>>, %arg5: memref<1x4x4xf32, #tpu.memory_space<vmem>>) attributes {dimension_semantics = [#tpu.dimension_semantics<parallel>, #tpu.dimension_semantics<arbitrary>, #tpu.dimension_semantics<arbitrary>], iteration_bounds = array<i64: 1, 2, 1>, scalar_prefetch = 0 : i64, scratch_operands = 0 : i64, tpu.core_type = #tpu.core_type<tc>, window_params = [{transform_indices = @transform_0, window_bounds = array<i64: 1, 4, 256>}, {transform_indices = @transform_1, window_bounds = array<i64: 1, 4, 1>}, {transform_indices = @transform_2, window_bounds = array<i64: 1, 4, 4>}]} {
    %c0_i32 = arith.constant 0 : i32
    %0 = arith.cmpi eq, %arg1, %c0_i32 : i32
    %c0_i32_0 = arith.constant 0 : i32
    %1 = arith.cmpi eq, %arg2, %c0_i32_0 : i32
    %2 = arith.andi %0, %1 : i1
    %3 = arith.extui %2 : i1 to i32
    %c0_i32_1 = arith.constant 0 : i32
    %4 = arith.cmpi ne, %3, %c0_i32_1 : i32
    scf.if %4 {
      %cst_17 = arith.constant 0.000000e+00 : f32
      %22 = vector.broadcast %cst_17 : f32 to vector<4x1xf32>
      %c0_18 = arith.constant 0 : index
      %c0_19 = arith.constant 0 : index
      %c0_20 = arith.constant 0 : index
      %23 = vector.load %arg4[%c0_18, %c0_19, %c0_20] : memref<1x4x1xf32, #tpu.memory_space<vmem>>, vector<1x4x1xf32>
      %24 = vector.shape_cast %23 : vector<1x4x1xf32> to vector<4x1xf32>
      %25 = vector.shape_cast %22 : vector<4x1xf32> to vector<1x4x1xf32>
      tpu.vector_store %arg4[%c0_18, %c0_19, %c0_20], %25 {strides = array<i32>} : memref<1x4x1xf32, #tpu.memory_space<vmem>>, vector<1x4x1xf32>,
      %cst_21 = arith.constant 0.000000e+00 : f32
      %26 = vector.broadcast %cst_21 : f32 to vector<4x4xf32>
      %c0_22 = arith.constant 0 : index
      %c0_23 = arith.constant 0 : index
      %c0_24 = arith.constant 0 : index
      %27 = vector.load %arg5[%c0_22, %c0_23, %c0_24] : memref<1x4x4xf32, #tpu.memory_space<vmem>>, vector<1x4x4xf32>
      %28 = vector.shape_cast %27 : vector<1x4x4xf32> to vector<4x4xf32>
      %29 = vector.shape_cast %26 : vector<4x4xf32> to vector<1x4x4xf32>
      tpu.vector_store %arg5[%c0_22, %c0_23, %c0_24], %29 {strides = array<i32>} : memref<1x4x4xf32, #tpu.memory_space<vmem>>, vector<1x4x4xf32>,
    } else {
    }
    %c0 = arith.constant 0 : index
    %c0_2 = arith.constant 0 : index
    %c0_3 = arith.constant 0 : index
    %5 = vector.load %arg3[%c0, %c0_2, %c0_3] : memref<1x4x256xf32, #tpu.memory_space<vmem>>, vector<1x4x256xf32>
    %6 = vector.shape_cast %5 : vector<1x4x256xf32> to vector<4x256xf32>
    %c0_4 = arith.constant 0 : index
    %c0_5 = arith.constant 0 : index
    %c0_6 = arith.constant 0 : index
    %7 = vector.load %arg4[%c0_4, %c0_5, %c0_6] : memref<1x4x1xf32, #tpu.memory_space<vmem>>, vector<1x4x1xf32>
    %8 = vector.shape_cast %7 : vector<1x4x1xf32> to vector<4x1xf32>
    %cst = arith.constant dense<0.000000e+00> : vector<4xf32>
    %9 = vector.multi_reduction <add>, %6, %cst [1] : vector<4x256xf32> to vector<4xf32>
    %10 = vector.shape_cast %9 : vector<4xf32> to vector<4x1xf32>
    %11 = arith.addf %8, %10 : vector<4x1xf32>
    %c0_7 = arith.constant 0 : index
    %c0_8 = arith.constant 0 : index
    %c0_9 = arith.constant 0 : index
    %12 = vector.load %arg4[%c0_7, %c0_8, %c0_9] : memref<1x4x1xf32, #tpu.memory_space<vmem>>, vector<1x4x1xf32>
    %13 = vector.shape_cast %12 : vector<1x4x1xf32> to vector<4x1xf32>
    %14 = vector.shape_cast %11 : vector<4x1xf32> to vector<1x4x1xf32>
    tpu.vector_store %arg4[%c0_7, %c0_8, %c0_9], %14 {strides = array<i32>} : memref<1x4x1xf32, #tpu.memory_space<vmem>>, vector<1x4x1xf32>,
    %c0_10 = arith.constant 0 : index
    %c0_11 = arith.constant 0 : index
    %c0_12 = arith.constant 0 : index
    %15 = vector.load %arg5[%c0_10, %c0_11, %c0_12] : memref<1x4x4xf32, #tpu.memory_space<vmem>>, vector<1x4x4xf32>
    %16 = vector.shape_cast %15 : vector<1x4x4xf32> to vector<4x4xf32>
    %cst_13 = arith.constant dense<0.000000e+00> : vector<4x4xf32>
    %17 = tpu.matmul %6, %6, %cst_13 {dimension_numbers = #tpu.dot_dimension_numbers<[1], [1], [0], [0], [0, 0, 1, 0], [], []>} : vector<4x256xf32>, vector<4x256xf32>, vector<4x4xf32> -> vector<4x4xf32>
    %18 = arith.addf %16, %17 : vector<4x4xf32>
    %c0_14 = arith.constant 0 : index
    %c0_15 = arith.constant 0 : index
    %c0_16 = arith.constant 0 : index
    %19 = vector.load %arg5[%c0_14, %c0_15, %c0_16] : memref<1x4x4xf32, #tpu.memory_space<vmem>>, vector<1x4x4xf32>
    %20 = vector.shape_cast %19 : vector<1x4x4xf32> to vector<4x4xf32>
    %21 = vector.shape_cast %18 : vector<4x4xf32> to vector<1x4x4xf32>
    tpu.vector_store %arg5[%c0_14, %c0_15, %c0_16], %21 {strides = array<i32>} : memref<1x4x4xf32, #tpu.memory_space<vmem>>, vector<1x4x4xf32>,
    return
  }
  func.func @transform_0(%arg0: i32, %arg1: i32, %arg2: i32) -> (i32, i32, i32) {
    %c1_i32 = arith.constant 1 : i32
    %0 = arith.muli %arg0, %c1_i32 : i32
    %1 = arith.addi %0, %arg2 : i32
    %c0_i32 = arith.constant 0 : i32
    %c0_i32_0 = arith.constant 0 : i32
    return %arg1, %c0_i32, %1 : i32, i32, i32
  }
  func.func @transform_1(%arg0: i32, %arg1: i32, %arg2: i32) -> (i32, i32, i32) {
    %c0_i32 = arith.constant 0 : i32
    %c0_i32_0 = arith.constant 0 : i32
    %c0_i32_1 = arith.constant 0 : i32
    return %arg0, %c0_i32, %c0_i32_0 : i32, i32, i32
  }
  func.func @transform_2(%arg0: i32, %arg1: i32, %arg2: i32) -> (i32, i32, i32) {
    %c0_i32 = arith.constant 0 : i32
    %c0_i32_0 = arith.constant 0 : i32
    %c0_i32_1 = arith.constant 0 : i32
    return %arg0, %c0_i32, %c0_i32_0 : i32, i32, i32
  }
}

module attributes {stable_mosaic.version = 11 : i64} {
  func.func @_apply_kernel(%arg0: i32, %arg1: i32, %arg2: memref<1x4x256xf32, #tpu.memory_space<vmem>>, %arg3: memref<32x4xf32, #tpu.memory_space<vmem>>, %arg4: memref<32x1xf32, #tpu.memory_space<vmem>>, %arg5: memref<1x32x256xf32, #tpu.memory_space<vmem>>) attributes {dimension_semantics = [#tpu.dimension_semantics<parallel>, #tpu.dimension_semantics<parallel>], iteration_bounds = array<i64: 2, 1>, scalar_prefetch = 0 : i64, scratch_operands = 0 : i64, tpu.core_type = #tpu.core_type<tc>, window_params = [{transform_indices = @transform_0, window_bounds = array<i64: 1, 4, 256>}, {pipeline_mode = #tpu.pipeline_mode<synchronous>, transform_indices = @transform_1, window_bounds = array<i64: 32, 4>}, {pipeline_mode = #tpu.pipeline_mode<synchronous>, transform_indices = @transform_2, window_bounds = array<i64: 32, 1>}, {transform_indices = @transform_3, window_bounds = array<i64: 1, 32, 256>}]} {
    %c0 = arith.constant 0 : index
    %c0_0 = arith.constant 0 : index
    %0 = vector.load %arg3[%c0, %c0_0] : memref<32x4xf32, #tpu.memory_space<vmem>>, vector<32x4xf32>
    %c0_1 = arith.constant 0 : index
    %c0_2 = arith.constant 0 : index
    %c0_3 = arith.constant 0 : index
    %1 = vector.load %arg2[%c0_1, %c0_2, %c0_3] : memref<1x4x256xf32, #tpu.memory_space<vmem>>, vector<1x4x256xf32>
    %2 = vector.shape_cast %1 : vector<1x4x256xf32> to vector<4x256xf32>
    %cst = arith.constant dense<0.000000e+00> : vector<32x256xf32>
    %3 = tpu.matmul %0, %2, %cst {dimension_numbers = #tpu.dot_dimension_numbers<[1], [0], [0], [1], [0, 0, 1, 1], [], []>} : vector<32x4xf32>, vector<4x256xf32>, vector<32x256xf32> -> vector<32x256xf32>
    %c0_4 = arith.constant 0 : index
    %c0_5 = arith.constant 0 : index
    %4 = vector.load %arg4[%c0_4, %c0_5] : memref<32x1xf32, #tpu.memory_space<vmem>>, vector<32x1xf32>
    %5 = vector.broadcast %4 : vector<32x1xf32> to vector<32x256xf32>
    %6 = arith.addf %3, %5 : vector<32x256xf32>
    %cst_6 = arith.constant 0.000000e+00 : f32
    %7 = vector.broadcast %cst_6 : f32 to vector<32x256xf32>
    %8 = arith.cmpf oge, %6, %7 : vector<32x256xf32>
    %cst_7 = arith.constant 1.000000e-01 : f32
    %9 = vector.broadcast %cst_7 : f32 to vector<32x256xf32>
    %10 = arith.mulf %9, %6 : vector<32x256xf32>
    %11 = arith.select %8, %6, %10 : vector<32x256xi1>, vector<32x256xf32>
    %c0_8 = arith.constant 0 : index
    %c0_9 = arith.constant 0 : index
    %c0_10 = arith.constant 0 : index
    %12 = vector.load %arg5[%c0_8, %c0_9, %c0_10] : memref<1x32x256xf32, #tpu.memory_space<vmem>>, vector<1x32x256xf32>
    %13 = vector.shape_cast %12 : vector<1x32x256xf32> to vector<32x256xf32>
    %14 = vector.shape_cast %11 : vector<32x256xf32> to vector<1x32x256xf32>
    tpu.vector_store %arg5[%c0_8, %c0_9, %c0_10], %14 {strides = array<i32>} : memref<1x32x256xf32, #tpu.memory_space<vmem>>, vector<1x32x256xf32>,
    return
  }
  func.func @transform_0(%arg0: i32, %arg1: i32) -> (i32, i32, i32) {
    %c0_i32 = arith.constant 0 : i32
    %c0_i32_0 = arith.constant 0 : i32
    return %arg0, %c0_i32, %arg1 : i32, i32, i32
  }
  func.func @transform_1(%arg0: i32, %arg1: i32) -> (i32, i32) {
    %c0_i32 = arith.constant 0 : i32
    %c0_i32_0 = arith.constant 0 : i32
    %c0_i32_1 = arith.constant 0 : i32
    return %c0_i32, %c0_i32_0 : i32, i32
  }
  func.func @transform_2(%arg0: i32, %arg1: i32) -> (i32, i32) {
    %c0_i32 = arith.constant 0 : i32
    %c0_i32_0 = arith.constant 0 : i32
    %c0_i32_1 = arith.constant 0 : i32
    return %c0_i32, %c0_i32_0 : i32, i32
  }
  func.func @transform_3(%arg0: i32, %arg1: i32) -> (i32, i32, i32) {
    %c0_i32 = arith.constant 0 : i32
    %c0_i32_0 = arith.constant 0 : i32
    return %arg0, %c0_i32, %arg1 : i32, i32, i32
  }
}

</mosaic_0001>

<llo_original>
// kernel: mul.13
$region0: #{mul.13}
  %s0 = inlined_call_operand.vmem [shape: f32[4,8], index: 0, kind: input, shape index: {}]
  %s1 = inlined_call_operand.vmem [shape: f32[32], index: 1, kind: output, shape index: {}]
  $region1: #{mul.13} parent=0
    #allocation0 [shape = 'u8[4096]{0}', space=vmem, size = 0x1000, scoped, tag = 'scoped mem for output reshape']
    #allocation1 [shape = 'u8[4096]{0}', space=vmem, size = 0x1000, scoped, tag = 'scoped mem for input reshape']
    %s3 = sshllo.u32 0, 4
    %v4 = vld [vmem:[%s0] sm:%s3]
    %5 = vst [vmem:[#allocation1] sm:%s3] %v4
    %v6 = vld [vmem:[#allocation1] sm:$0x1]
    %vm7 = vcmask 64512
    %8 = vst.msk [vmem:[#allocation0] sm:$0x1] %vm7, %v6
    %s9 = scalar_lea.vmem [#allocation1], 3
    %v10 = vld [vmem:[%s9] sm:$0x1]
    %11 = vrot.lane.b32.xlu0 %v10, 24
    %v12 = vpop.permute.xlu0 %11
    %vm13 = vcmask 261312
    %14 = vst.msk [vmem:[#allocation0] sm:$0x1] %vm13, %v12
    %s15 = scalar_lea.vmem [#allocation1], 2
    %v16 = vld [vmem:[%s15] sm:$0x1]
    %17 = vrot.lane.b32.xlu0 %v16, 16
    %v18 = vpop.permute.xlu0 %17
    %vm19 = vcmask 195712
    %20 = vst.msk [vmem:[#allocation0] sm:$0x1] %vm19, %v18
    %s21 = scalar_lea.vmem [#allocation1], 1
    %v22 = vld [vmem:[%s21] sm:$0x1]
    %23 = vrot.lane.b32.xlu0 %v22, 8
    %v24 = vpop.permute.xlu0 %23
    %vm25 = vcmask 130112
    %26 = vst.msk [vmem:[#allocation0] sm:$0x1] %vm25, %v24
    %s28 = sshllo.u32 0, 1
    %v30 = vld [vmem:[#allocation0] sm:%s28]
    %s31 = sshllo.u32 0, 1
    %32 = vst [vmem:[%s1] sm:%s31] %v30

// kernel: tile.18
$region0: #{tile.18}
  #allocation0 [shape = 's32[1]{0}', space=sflag, size = 0x4, scoped, tag = 'scoped memory for tile.18']
  %s0 = inlined_call_operand.vmem [shape: f32[8], index: 0, kind: input, shape index: {}]
  %s1 = inlined_call_operand.vmem [shape: f32[4,8], index: 1, kind: output, shape index: {}]
  // Predicated region
  $region2: #{tile.18} parent=0 // pred_check
    _
  $region3: #{tile.18} parent=0 // pred_check_branch
    %3 = sbr.rel (0) target = $region5
  $region4: #{tile.18} parent=0 // pred_region
    _
  $region5: #{tile.18} parent=0 // pred_fallthru
    _
  %v4 = vld [vmem:[%s0] ss:$0 sm:$0xff]
  %5 = vst [vmem:[%s1] sm:$0xf] %v4

// kernel: tile.0
$region0: #{tile.0}
  %s0 = inlined_call_operand.vmem [shape: f32[4,8], index: 0, kind: input, shape index: {}]
  %s1 = inlined_call_operand.vmem [shape: f32[32,1], index: 1, kind: output, shape index: {}]
  $region1: #{tile.0} parent=0
    #allocation0 [shape = 'u8[4096]{0}', space=vmem, size = 0x1000, scoped, tag = 'scoped mem for input reshape']
    %s3 = sshllo.u32 0, 4
    %v4 = vld [vmem:[%s0] sm:%s3]
    %5 = vst [vmem:[#allocation0] sm:%s3] %v4
    %v6 = vld [vmem:[#allocation0] sm:$0xf]
    %vm7 = vcmask 7168
    %8 = vst.msk [vmem:[%s1] ss:$8 sm:$0xf] %vm7, %v6
    %v9 = vld [vmem:[#allocation0] sm:$0xf]
    %10 = vrot.lane.b32.xlu0 %v9, 127
    %v11 = vpop.permute.xlu0 %10
    %vm12 = vcmask 7168
    %s13 = scalar_lea.vmem %s1, 1
    %14 = vst.msk [vmem:[%s13] ss:$8 sm:$0xf] %vm12, %v11
    %v15 = vld [vmem:[#allocation0] sm:$0xf]
    %16 = vrot.lane.b32.xlu0 %v15, 126
    %v17 = vpop.permute.xlu0 %16
    %vm18 = vcmask 7168
    %s19 = scalar_lea.vmem %s1, 2
    %20 = vst.msk [vmem:[%s19] ss:$8 sm:$0xf] %vm18, %v17
    %v21 = vld [vmem:[#allocation0] sm:$0xf]
    %22 = vrot.lane.b32.xlu0 %v21, 125
    %v23 = vpop.permute.xlu0 %22
    %vm24 = vcmask 7168
    %s25 = scalar_lea.vmem %s1, 3
    %26 = vst.msk [vmem:[%s25] ss:$8 sm:$0xf] %vm24, %v23
    %v27 = vld [vmem:[#allocation0] sm:$0xf]
    %28 = vrot.lane.b32.xlu0 %v27, 124
    %v29 = vpop.permute.xlu0 %28
    %vm30 = vcmask 7168
    %s31 = scalar_lea.vmem %s1, 4
    %32 = vst.msk [vmem:[%s31] ss:$8 sm:$0xf] %vm30, %v29
    %v33 = vld [vmem:[#allocation0] sm:$0xf]
    %34 = vrot.lane.b32.xlu0 %v33, 123
    %v35 = vpop.permute.xlu0 %34
    %vm36 = vcmask 7168
    %s37 = scalar_lea.vmem %s1, 5
    %38 = vst.msk [vmem:[%s37] ss:$8 sm:$0xf] %vm36, %v35
    %v39 = vld [vmem:[#allocation0] sm:$0xf]
    %40 = vrot.lane.b32.xlu0 %v39, 122
    %v41 = vpop.permute.xlu0 %40
    %vm42 = vcmask 7168
    %s43 = scalar_lea.vmem %s1, 6
    %44 = vst.msk [vmem:[%s43] ss:$8 sm:$0xf] %vm42, %v41
    %v45 = vld [vmem:[#allocation0] sm:$0xf]
    %46 = vrot.lane.b32.xlu0 %v45, 121
    %v47 = vpop.permute.xlu0 %46
    %vm48 = vcmask 7168
    %s49 = scalar_lea.vmem %s1, 7
    %50 = vst.msk [vmem:[%s49] ss:$8 sm:$0xf] %vm48, %v47

// kernel: up_forward.2
$region0: #{up_forward.2}
  #allocation0 [shape = 'u32[]', space=smem, size = 0x4, offset = 0x4, fixed_abs, tag = 'smem constant byte address 0x4 - core index']
  #allocation1 [shape = 'u32[144,128]{1,0:T(1,128)}', space=vmem, size = 0x12000, scoped, tag = 'internal scratch']
  %s0 = inlined_call_operand.vmem [shape: f32[2,4,256], index: 0, kind: input, shape index: {}]
  %s1 = inlined_call_operand.vmem [shape: f32[1,4,1], index: 1, kind: output, shape index: {0}]
  %s2 = inlined_call_operand.vmem [shape: f32[1,4,4], index: 2, kind: output, shape index: {1}]
  %3 = xla_tuple %s1, %s2
  %s4 = sld [smem:[#allocation0]]
  $region49: #{up_forward.2} parent=0
    _
  %s6 = ssub.s32 1, %s4
  %s7 = scalar_select 0, %s6, %s4
  loop: start=0, step=1, limit=4
  $region2: #{up_forward.2} parent=0 // loop_pre_header
    _
  $region3: #{up_forward.2} parent=0 // loop_header
    %s9 = sphi 0, %s13
    %p10 = scmp.ge.s32.totalorder %s9, 4
    %s16 = sphi 0, %s35
    %s17 = sphi 0, %s31
    %s18 = sphi 0, %s27
    %s19 = sphi 0, %s16
    %s20 = sphi 0, %s17
    %s21 = sphi 0, %s18
    %s22 = sphi 0, %s19
    %s23 = sphi 0, %s20
    %s24 = sphi 0, %s21
    %s42 = sphi 0, %s44
    %s45 = sphi 0, %s42
    %s46 = sphi 0, %s45
    %s62 = sphi 0, %s46
    %s68 = sphi 0, %s70
    %s71 = sphi 0, %s68
    %s72 = sphi 0, %s71
    %s88 = sphi 0, %s72
    %s94 = sphi 0, %s96
    %s97 = sphi 0, %s94
    %s98 = sphi 0, %s97
    %s114 = sphi 0, %s98
  $region4: #{up_forward.2} parent=0 // loop_header_branch
    %12 = sbr.rel (%p10) target = $region8
  $region5: #{up_forward.2} parent=0 // loop_body
    %s14 = ssub.s32 %s9, 1
    %s15 = ssub.s32 %s9, 2
    %s25 = sadd.s32 1, %s18
    %p26 = scmp.ge.s32.totalorder %s25, 1
    %s27 = scalar_select %p26, 0, %s25
    %s28 = sadd.s32 1, %s17
    %s29 = scalar_select %p26, %s28, %s17
    %p30 = scmp.ge.s32.totalorder %s29, 2
    %s31 = scalar_select %p30, 0, %s29
    %s32 = sadd.s32 1, %s16
    %s33 = scalar_select %p30, %s32, %s16
    %p34 = scmp.ge.s32.totalorder %s33, 1
    %s35 = scalar_select %p34, 0, %s33
    %s36 = sadd.s32 %s16, %s18
    %s37 = sadd.s32 %s35, %s27
    %s38 = ssub.s32 %s17, %s31
    %s39 = ssub.s32 %s36, %s37
    %s40 = sor.u32 %s38, %s39
    %p41 = scmp.eq.s32.totalorder %s40, 0
    %s43 = sadd.s32 %s42, 1
    %s44 = scalar_select %p41, %s42, %s43
    %p47 = pneg %p41
    %p48 = scmp.eq.s32.totalorder %s9, 1
    %p49 = por %p47, %p48
    %p50 = scmp.ne.s32.totalorder %s42, %s45
    %p51 = scmp.eq.s32.totalorder %s9, 0
    %p52 = por %p50, %p51
    %p53 = scmp.ne.s32.totalorder %s42, %s45
    %p54 = scmp.eq.s32.totalorder %s14, 1
    %p55 = por %p53, %p54
    %p56 = scmp.ne.s32.totalorder %s45, %s46
    %p57 = scmp.eq.s32.totalorder %s14, 0
    %p58 = por %p56, %p57
    %p59 = scmp.ne.s32.totalorder %s45, %s46
    %p60 = scmp.eq.s32.totalorder %s15, 1
    %p61 = por %p59, %p60
    %p63 = scmp.ne.s32.totalorder %s46, %s62
    %p64 = scmp.eq.s32.totalorder %s15, 0
    %p65 = por %p63, %p64
    %s66 = ssub.s32 %s16, %s35
    %p67 = scmp.eq.s32.totalorder %s66, 0
    %s69 = sadd.s32 %s68, 1
    %s70 = scalar_select %p67, %s68, %s69
    %p73 = pneg %p67
    %p74 = scmp.eq.s32.totalorder %s9, 1
    %p75 = por %p73, %p74
    %p76 = scmp.ne.s32.totalorder %s68, %s71
    %p77 = scmp.eq.s32.totalorder %s9, 0
    %p78 = por %p76, %p77
    %p79 = scmp.ne.s32.totalorder %s68, %s71
    %p80 = scmp.eq.s32.totalorder %s14, 1
    %p81 = por %p79, %p80
    %p82 = scmp.ne.s32.totalorder %s71, %s72
    %p83 = scmp.eq.s32.totalorder %s14, 0
    %p84 = por %p82, %p83
    %p85 = scmp.ne.s32.totalorder %s71, %s72
    %p86 = scmp.eq.s32.totalorder %s15, 1
    %p87 = por %p85, %p86
    %p89 = scmp.ne.s32.totalorder %s72, %s88
    %p90 = scmp.eq.s32.totalorder %s15, 0
    %p91 = por %p89, %p90
    %s92 = ssub.s32 %s16, %s35
    %p93 = scmp.eq.s32.totalorder %s92, 0
    %s95 = sadd.s32 %s94, 1
    %s96 = scalar_select %p93, %s94, %s95
    %p99 = pneg %p93
    %p100 = scmp.eq.s32.totalorder %s9, 1
    %p101 = por %p99, %p100
    %p102 = scmp.ne.s32.totalorder %s94, %s97
    %p103 = scmp.eq.s32.totalorder %s9, 0
    %p104 = por %p102, %p103
    %p105 = scmp.ne.s32.totalorder %s94, %s97
    %p106 = scmp.eq.s32.totalorder %s14, 1
    %p107 = por %p105, %p106
    %p108 = scmp.ne.s32.totalorder %s97, %s98
    %p109 = scmp.eq.s32.totalorder %s14, 0
    %p110 = por %p108, %p109
    %p111 = scmp.ne.s32.totalorder %s97, %s98
    %p112 = scmp.eq.s32.totalorder %s15, 1
    %p113 = por %p111, %p112
    %p115 = scmp.ne.s32.totalorder %s98, %s114
    %p116 = scmp.eq.s32.totalorder %s15, 0
    %p117 = por %p115, %p116
    %p118 = scmp.le.s32.totalorder 1, %s9
    %p119 = scmp.lt.s32.totalorder %s9, 3
    %p120 = pnand %p118, %p119
    %p121 = pneg %p120
    // Predicated region
    $region9: #{up_forward.2} parent=5 // pred_check
      _
    $region10: #{up_forward.2} parent=5 // pred_check_branch
      %123 = sbr.rel (%p120) target = $region12
    $region11: #{up_forward.2} parent=5 // pred_region
      %s124 = ssub.s32 %s9, 1
    $region12: #{up_forward.2} parent=5 // pred_fallthru
      _
    %p125 = scmp.lt.s32.totalorder %s9, 2
    // Predicated region
    $region13: #{up_forward.2} parent=5 // pred_check
      %p126 = pneg %p125
    $region14: #{up_forward.2} parent=5 // pred_check_branch
      %128 = sbr.rel (%p126) target = $region16
    $region15: #{up_forward.2} parent=5 // pred_region
      // Predicated region
      $region17: #{up_forward.2} parent=15 // pred_check
        %p129 = pneg %p52
      $region18: #{up_forward.2} parent=15 // pred_check_branch
        %131 = sbr.rel (%p129) target = $region20
      $region19: #{up_forward.2} parent=15 // pred_region
        %s132 = sadd.s32 %s16, %s18
        %s133 = smul.u32 2, %s132
        %p134 = scmp.lt.s32.totalorder %s17, 1
        %s135 = scalar_select %p134, %s17, 1
        %p136 = scmp.lt.s32.totalorder %s133, 1
        %s137 = scalar_select %p136, %s133, 1
        %s138 = smul.addr %s135, 2
        %s139 = sadd.s32 %s137, %s138
        %s140 = smul.addr %s139, 4
        %s141 = scalar_lea.vmem %s0, %s140
        %s142 = sadd.s32 %s16, %s18
        %s143 = smul.u32 2, %s142
      $region20: #{up_forward.2} parent=15 // pred_fallthru
        _
    $region16: #{up_forward.2} parent=5 // pred_fallthru
      _
    %p144 = scmp.le.s32.totalorder 1, %s9
    %p145 = scmp.lt.s32.totalorder %s9, 3
    %p146 = pnand %p144, %p145
    %p147 = pneg %p146
    // Predicated region
    $region21: #{up_forward.2} parent=5 // pred_check
      _
    $region22: #{up_forward.2} parent=5 // pred_check_branch
      %149 = sbr.rel (%p146) target = $region24
    $region23: #{up_forward.2} parent=5 // pred_region
      %s150 = ssub.s32 %s9, 1
      %s151 = sadd.s32 %s19, %s21
      %s152 = smul.u32 2, %s151
      %p153 = scmp.lt.s32.totalorder %s20, 1
      %s154 = scalar_select %p153, %s20, 1
      %p155 = scmp.lt.s32.totalorder %s152, 1
      %s156 = scalar_select %p155, %s152, 1
      %s157 = smul.addr %s154, 2
      %s158 = sadd.s32 %s156, %s157
      %s159 = smul.addr %s158, 4
      %s160 = scalar_lea.vmem %s0, %s159
      %p161 = pneg %p58
      %p162 = pneg %p55
      %p163 = pneg %p84
      %p164 = pneg %p81
      %p165 = scmp.lt.s32.totalorder %s19, 0
      %s166 = scalar_select %p165, %s19, 0
      %s167 = smul.addr %s166, 4
      %s168 = scalar_lea.vmem %s1, %s167
      %p169 = pneg %p110
      %p170 = pneg %p107
      %p171 = scmp.lt.s32.totalorder %s19, 0
      %s172 = scalar_select %p171, %s19, 0
      %s173 = smul.addr %s172, 4
      %s174 = scalar_lea.vmem %s2, %s173
      %s175 = sadd.s32 %s19, %s21
      %s176 = smul.u32 2, %s175
      %p177 = scmp.lt.s32.totalorder %s20, 1
      %s178 = scalar_select %p177, %s20, 1
      %p179 = scmp.lt.s32.totalorder %s176, 1
      %s180 = scalar_select %p179, %s176, 1
      %s181 = smul.addr %s178, 2
      %s182 = sadd.s32 %s180, %s181
      %s183 = smul.addr %s182, 4
      %s184 = scalar_lea.vmem %s0, %s183
      %s185 = sadd.s32 %s19, %s21
      %s186 = smul.u32 2, %s185
      %p187 = scmp.lt.s32.totalorder %s19, 0
      %s188 = scalar_select %p187, %s19, 0
      %s189 = smul.addr %s188, 4
      %s190 = scalar_lea.vmem %s1, %s189
      %p191 = scmp.lt.s32.totalorder %s19, 0
      %s192 = scalar_select %p191, %s19, 0
      %s193 = smul.addr %s192, 4
      %s194 = scalar_lea.vmem %s2, %s193
      %p195 = scmp.eq.s32.totalorder %s20, 0
      %p196 = scmp.eq.s32.totalorder %s21, 0
      %p197 = pnand %p195, %p196
      %p198 = pneg %p197
      // Predicated region
      $region25: #{up_forward.2} parent=23 // pred_check
        _
      $region26: #{up_forward.2} parent=23 // pred_check_branch
        %200 = sbr.rel (%p197) target = $region28
      $region27: #{up_forward.2} parent=23 // pred_region
        %vm201 = vcmask 3072
        %202 = vst.msk [vmem:[%s190] sm:$0xf] %vm201, 0.0
        %vm203 = vcmask 27648
        %204 = vst.msk [vmem:[%s194] sm:$0xf] %vm203, 0.0
      $region28: #{up_forward.2} parent=23 // pred_fallthru
        _
      %v205 = vld [vmem:[%s184] sm:$0xff]
      %v206 = vld [vmem:[%s190] sm:$0xf]
      %v208 = vcombine.high %v205, %v205
      %vm210 = vcmask 1043456
      %v211 = vsel %vm210, %v205, 0.0
      %v212 = vsel %vm210, %v208, 0.0
      %v213 = vadd.f32 %v211, %v212
      %214 = vadd.xlane.f32.xlu0 %v213
      %v215 = vpop.xlane.xlu0 %214
      %v216 = vadd.f32 %v206, %v215
      %vm217 = vcmask 3072
      %218 = vst.msk [vmem:[%s190] sm:$0xf] %vm217, %v216
      %v219 = vld [vmem:[%s194] sm:$0xf]
      %220 = vmatprep.subr.mxu0 %v208
      %221 = vmatpush1.xpose.msra.mxu0 %v205
      %222 = vmatprep.subr.mxu0 0.0
      %223 = vmatpush1.xpose.msra.mxu0 0.0
      %224 = vmatprep.subr.mxu0 0.0
      %225 = vmatpush1.xpose.msra.mxu0 0.0
      %226 = vmatprep.subr.mxu0 0.0
      %227 = vmatpush1.xpose.msra.mxu0 0.0
      %228 = vmatprep.subr.mxu0 0.0
      %229 = vmatpush1.xpose.msra.mxu0 0.0
      %230 = vmatprep.subr.mxu0 0.0
      %231 = vmatpush1.xpose.msra.mxu0 0.0
      %232 = vmatprep.subr.mxu0 0.0
      %233 = vmatpush1.xpose.msra.mxu0 0.0
      %234 = vmatprep.subr.mxu0 0.0
      %235 = vmatpush1.xpose.msra.mxu0 0.0
      %236 = vmatprep.subr.mxu0 0.0
      %237 = vmatpush1.xpose.msra.mxu0 0.0
      %238 = vmatprep.subr.mxu0 0.0
      %239 = vmatpush1.xpose.msra.mxu0 0.0
      %240 = vmatprep.subr.mxu0 0.0
      %241 = vmatpush1.xpose.msra.mxu0 0.0
      %242 = vmatprep.subr.mxu0 0.0
      %243 = vmatpush1.xpose.msra.mxu0 0.0
      %244 = vmatprep.subr.mxu0 0.0
      %245 = vmatpush1.xpose.msra.mxu0 0.0
      %246 = vmatprep.subr.mxu0 0.0
      %247 = vmatpush1.xpose.msra.mxu0 0.0
      %248 = vmatprep.subr.mxu0 0.0
      %249 = vmatpush1.xpose.msra.mxu0 0.0
      %250 = vmatprep.subr.mxu0 0.0
      %251 = vmatpush1.xpose.msra.mxu0 0.0
      %252 = vmatprep.subr.mxu0 0.0
      %253 = vmatpush1.xpose.msra.mxu0 0.0
      %254 = vmatprep.subr.mxu0 0.0
      %255 = vmatpush1.xpose.msra.mxu0 0.0
      %256 = vmatprep.subr.mxu0 0.0
      %257 = vmatpush1.xpose.msra.mxu0 0.0
      %258 = vmatprep.subr.mxu0 0.0
      %259 = vmatpush1.xpose.msra.mxu0 0.0
      %260 = vmatprep.subr.mxu0 0.0
      %261 = vmatpush1.xpose.msra.mxu0 0.0
      %262 = vmatprep.subr.mxu0 0.0
      %263 = vmatpush1.xpose.msra.mxu0 0.0
      %264 = vmatprep.subr.mxu0 0.0
      %265 = vmatpush1.xpose.msra.mxu0 0.0
      %266 = vmatprep.subr.mxu0 0.0
      %267 = vmatpush1.xpose.msra.mxu0 0.0
      %268 = vmatprep.subr.mxu0 0.0
      %269 = vmatpush1.xpose.msra.mxu0 0.0
      %270 = vmatprep.subr.mxu0 0.0
      %271 = vmatpush1.xpose.msra.mxu0 0.0
      %272 = vmatprep.subr.mxu0 0.0
      %273 = vmatpush1.xpose.msra.mxu0 0.0
      %274 = vmatprep.subr.mxu0 0.0
      %275 = vmatpush1.xpose.msra.mxu0 0.0
      %276 = vmatprep.subr.mxu0 0.0
      %277 = vmatpush1.xpose.msra.mxu0 0.0
      %278 = vmatprep.subr.mxu0 0.0
      %279 = vmatpush1.xpose.msra.mxu0 0.0
      %280 = vmatprep.subr.mxu0 0.0
      %281 = vmatpush1.xpose.msra.mxu0 0.0
      %282 = vmatprep.subr.mxu0 0.0
      %283 = vmatpush1.xpose.msra.mxu0 0.0
      %284 = vmatprep.mubr.f32.mxu0 %v208
      %285 = vmatmul.mubr.f32.gmra.mrb[0].mxu0 %v205
      %v286 = vpop.f32.mrb[0].mxu0
      %v287 = vadd.f32 0.0, %v286
      %v288 = vpop.f32.mrb[0].mxu0
      %289 = vdwg.mxu0
      %v290 = vadd.f32 %v219, %v287
      %vm291 = vcmask 27648
      %292 = vst.msk [vmem:[%s194] sm:$0xf] %vm291, %v290
      %p293 = scmp.lt.s32.totalorder %s19, 0
      %s294 = scalar_select %p293, %s19, 0
      %s295 = smul.addr %s294, 4
      %s296 = scalar_lea.vmem %s1, %s295
      %p297 = scmp.lt.s32.totalorder %s19, 0
      %s298 = scalar_select %p297, %s19, 0
      %s299 = smul.addr %s298, 4
      %s300 = scalar_lea.vmem %s2, %s299
      // Predicated region
      $region29: #{up_forward.2} parent=23 // pred_check
        %p301 = pneg %p81
      $region30: #{up_forward.2} parent=23 // pred_check_branch
        %303 = sbr.rel (%p301) target = $region32
      $region31: #{up_forward.2} parent=23 // pred_region
        _
      $region32: #{up_forward.2} parent=23 // pred_fallthru
        _
      // Predicated region
      $region33: #{up_forward.2} parent=23 // pred_check
        %p304 = pneg %p107
      $region34: #{up_forward.2} parent=23 // pred_check_branch
        %306 = sbr.rel (%p304) target = $region36
      $region35: #{up_forward.2} parent=23 // pred_region
        _
      $region36: #{up_forward.2} parent=23 // pred_fallthru
        _
      // Predicated region
      $region37: #{up_forward.2} parent=23 // pred_check
        %p307 = pneg %p81
      $region38: #{up_forward.2} parent=23 // pred_check_branch
        %309 = sbr.rel (%p307) target = $region40
      $region39: #{up_forward.2} parent=23 // pred_region
        %p310 = scmp.lt.s32.totalorder %s19, 0
        %s311 = scalar_select %p310, %s19, 0
        %s312 = smul.addr %s311, 4
        %s313 = scalar_lea.vmem %s1, %s312
      $region40: #{up_forward.2} parent=23 // pred_fallthru
        _
      // Predicated region
      $region41: #{up_forward.2} parent=23 // pred_check
        %p314 = pneg %p107
      $region42: #{up_forward.2} parent=23 // pred_check_branch
        %316 = sbr.rel (%p314) target = $region44
      $region43: #{up_forward.2} parent=23 // pred_region
        %p317 = scmp.lt.s32.totalorder %s19, 0
        %s318 = scalar_select %p317, %s19, 0
        %s319 = smul.addr %s318, 4
        %s320 = scalar_lea.vmem %s2, %s319
      $region44: #{up_forward.2} parent=23 // pred_fallthru
        _
    $region24: #{up_forward.2} parent=5 // pred_fallthru
      _
    %p321 = scmp.le.s32.totalorder 2, %s9
    // Predicated region
    $region45: #{up_forward.2} parent=5 // pred_check
      %p322 = pneg %p321
    $region46: #{up_forward.2} parent=5 // pred_check_branch
      %324 = sbr.rel (%p322) target = $region48
    $region47: #{up_forward.2} parent=5 // pred_region
      %s325 = ssub.s32 %s9, 2
    $region48: #{up_forward.2} parent=5 // pred_fallthru
      _
  $region6: #{up_forward.2} parent=0 // loop_footer
    %s13 = sadd.s32 1, %s9
  $region7: #{up_forward.2} parent=0 // loop_footer_branch
    %8 = sbr.rel target = $region3
  $region8: #{up_forward.2} parent=0 // loop_exit
    _

// kernel: up_forward.3
$region0: #{up_forward.3}
  #allocation0 [shape = 'u32[]', space=smem, size = 0x4, offset = 0x4, fixed_abs, tag = 'smem constant byte address 0x4 - core index']
  #allocation1 [shape = 'u32[144,128]{1,0:T(1,128)}', space=vmem, size = 0x12000, scoped, tag = 'internal scratch']
  %s0 = inlined_call_operand.vmem [shape: f32[2,4,256], index: 0, kind: input, shape index: {}]
  %s1 = inlined_call_operand.vmem [shape: f32[32,4], index: 1, kind: input, shape index: {}]
  %s2 = inlined_call_operand.vmem [shape: f32[32,1], index: 2, kind: input, shape index: {}]
  %s3 = inlined_call_operand.vmem [shape: f32[2,32,256], index: 3, kind: output, shape index: {}]
  %s4 = sld [smem:[#allocation0]]
  $region45: #{up_forward.3} parent=0
    _
  %s6 = ssub.s32 1, %s4
  %s7 = scalar_select 0, %s6, %s4
  loop: start=0, step=1, limit=4
  $region2: #{up_forward.3} parent=0 // loop_pre_header
    _
  $region3: #{up_forward.3} parent=0 // loop_header
    %s9 = sphi 0, %s13
    %p10 = scmp.ge.s32.totalorder %s9, 4
    %s16 = sphi 0, %s28
    %s17 = sphi 0, %s24
    %s18 = sphi 0, %s16
    %s19 = sphi 0, %s17
    %s20 = sphi 0, %s18
    %s21 = sphi 0, %s19
    %s33 = sphi 0, %s35
    %s36 = sphi 0, %s33
    %s37 = sphi 0, %s36
    %s53 = sphi 0, %s37
    %s57 = sphi 0, %s57
    %s59 = sphi 0, %s57
    %s60 = sphi 0, %s59
    %s74 = sphi 0, %s60
    %s78 = sphi 0, %s78
    %s80 = sphi 0, %s78
    %s81 = sphi 0, %s80
    %s95 = sphi 0, %s81
    %s103 = sphi 0, %s105
    %s106 = sphi 0, %s103
    %s107 = sphi 0, %s106
    %s123 = sphi 0, %s107
  $region4: #{up_forward.3} parent=0 // loop_header_branch
    %12 = sbr.rel (%p10) target = $region8
  $region5: #{up_forward.3} parent=0 // loop_body
    %s14 = ssub.s32 %s9, 1
    %s15 = ssub.s32 %s9, 2
    %s22 = sadd.s32 1, %s17
    %p23 = scmp.ge.s32.totalorder %s22, 1
    %s24 = scalar_select %p23, 0, %s22
    %s25 = sadd.s32 1, %s16
    %s26 = scalar_select %p23, %s25, %s16
    %p27 = scmp.ge.s32.totalorder %s26, 2
    %s28 = scalar_select %p27, 0, %s26
    %s29 = ssub.s32 %s16, %s28
    %s30 = ssub.s32 %s17, %s24
    %s31 = sor.u32 %s29, %s30
    %p32 = scmp.eq.s32.totalorder %s31, 0
    %s34 = sadd.s32 %s33, 1
    %s35 = scalar_select %p32, %s33, %s34
    %p38 = pneg %p32
    %p39 = scmp.eq.s32.totalorder %s9, 1
    %p40 = por %p38, %p39
    %p41 = scmp.ne.s32.totalorder %s33, %s36
    %p42 = scmp.eq.s32.totalorder %s9, 0
    %p43 = por %p41, %p42
    %p44 = scmp.ne.s32.totalorder %s33, %s36
    %p45 = scmp.eq.s32.totalorder %s14, 1
    %p46 = por %p44, %p45
    %p47 = scmp.ne.s32.totalorder %s36, %s37
    %p48 = scmp.eq.s32.totalorder %s14, 0
    %p49 = por %p47, %p48
    %p50 = scmp.ne.s32.totalorder %s36, %s37
    %p51 = scmp.eq.s32.totalorder %s15, 1
    %p52 = por %p50, %p51
    %p54 = scmp.ne.s32.totalorder %s37, %s53
    %p55 = scmp.eq.s32.totalorder %s15, 0
    %p56 = por %p54, %p55
    %s58 = sadd.s32 %s57, 1
    %p61 = scmp.eq.s32.totalorder %s9, 1
    %p62 = scmp.ne.s32.totalorder %s57, %s59
    %p63 = scmp.eq.s32.totalorder %s9, 0
    %p64 = por %p62, %p63
    %p65 = scmp.ne.s32.totalorder %s57, %s59
    %p66 = scmp.eq.s32.totalorder %s14, 1
    %p67 = por %p65, %p66
    %p68 = scmp.ne.s32.totalorder %s59, %s60
    %p69 = scmp.eq.s32.totalorder %s14, 0
    %p70 = por %p68, %p69
    %p71 = scmp.ne.s32.totalorder %s59, %s60
    %p72 = scmp.eq.s32.totalorder %s15, 1
    %p73 = por %p71, %p72
    %p75 = scmp.ne.s32.totalorder %s60, %s74
    %p76 = scmp.eq.s32.totalorder %s15, 0
    %p77 = por %p75, %p76
    %s79 = sadd.s32 %s78, 1
    %p82 = scmp.eq.s32.totalorder %s9, 1
    %p83 = scmp.ne.s32.totalorder %s78, %s80
    %p84 = scmp.eq.s32.totalorder %s9, 0
    %p85 = por %p83, %p84
    %p86 = scmp.ne.s32.totalorder %s78, %s80
    %p87 = scmp.eq.s32.totalorder %s14, 1
    %p88 = por %p86, %p87
    %p89 = scmp.ne.s32.totalorder %s80, %s81
    %p90 = scmp.eq.s32.totalorder %s14, 0
    %p91 = por %p89, %p90
    %p92 = scmp.ne.s32.totalorder %s80, %s81
    %p93 = scmp.eq.s32.totalorder %s15, 1
    %p94 = por %p92, %p93
    %p96 = scmp.ne.s32.totalorder %s81, %s95
    %p97 = scmp.eq.s32.totalorder %s15, 0
    %p98 = por %p96, %p97
    %s99 = ssub.s32 %s16, %s28
    %s100 = ssub.s32 %s17, %s24
    %s101 = sor.u32 %s99, %s100
    %p102 = scmp.eq.s32.totalorder %s101, 0
    %s104 = sadd.s32 %s103, 1
    %s105 = scalar_select %p102, %s103, %s104
    %p108 = pneg %p102
    %p109 = scmp.eq.s32.totalorder %s9, 1
    %p110 = por %p108, %p109
    %p111 = scmp.ne.s32.totalorder %s103, %s106
    %p112 = scmp.eq.s32.totalorder %s9, 0
    %p113 = por %p111, %p112
    %p114 = scmp.ne.s32.totalorder %s103, %s106
    %p115 = scmp.eq.s32.totalorder %s14, 1
    %p116 = por %p114, %p115
    %p117 = scmp.ne.s32.totalorder %s106, %s107
    %p118 = scmp.eq.s32.totalorder %s14, 0
    %p119 = por %p117, %p118
    %p120 = scmp.ne.s32.totalorder %s106, %s107
    %p121 = scmp.eq.s32.totalorder %s15, 1
    %p122 = por %p120, %p121
    %p124 = scmp.ne.s32.totalorder %s107, %s123
    %p125 = scmp.eq.s32.totalorder %s15, 0
    %p126 = por %p124, %p125
    %p127 = scmp.le.s32.totalorder 1, %s9
    %p128 = scmp.lt.s32.totalorder %s9, 3
    %p129 = pnand %p127, %p128
    %p130 = pneg %p129
    // Predicated region
    $region9: #{up_forward.3} parent=5 // pred_check
      _
    $region10: #{up_forward.3} parent=5 // pred_check_branch
      %132 = sbr.rel (%p129) target = $region12
    $region11: #{up_forward.3} parent=5 // pred_region
      %s133 = ssub.s32 %s9, 1
      // Predicated region
      $region13: #{up_forward.3} parent=11 // pred_check
        %p134 = pneg %p70
      $region14: #{up_forward.3} parent=11 // pred_check_branch
        %136 = sbr.rel (%p134) target = $region16
      $region15: #{up_forward.3} parent=11 // pred_region
        _
      $region16: #{up_forward.3} parent=11 // pred_fallthru
        _
      // Predicated region
      $region17: #{up_forward.3} parent=11 // pred_check
        %p137 = pneg %p91
      $region18: #{up_forward.3} parent=11 // pred_check_branch
        %139 = sbr.rel (%p137) target = $region20
      $region19: #{up_forward.3} parent=11 // pred_region
        _
      $region20: #{up_forward.3} parent=11 // pred_fallthru
        _
    $region12: #{up_forward.3} parent=5 // pred_fallthru
      _
    %p140 = scmp.lt.s32.totalorder %s9, 2
    // Predicated region
    $region21: #{up_forward.3} parent=5 // pred_check
      %p141 = pneg %p140
    $region22: #{up_forward.3} parent=5 // pred_check_branch
      %143 = sbr.rel (%p141) target = $region24
    $region23: #{up_forward.3} parent=5 // pred_region
      // Predicated region
      $region25: #{up_forward.3} parent=23 // pred_check
        %p144 = pneg %p43
      $region26: #{up_forward.3} parent=23 // pred_check_branch
        %146 = sbr.rel (%p144) target = $region28
      $region27: #{up_forward.3} parent=23 // pred_region
        %s147 = smul.u32 2, %s17
        %p148 = scmp.lt.s32.totalorder %s16, 1
        %s149 = scalar_select %p148, %s16, 1
        %p150 = scmp.lt.s32.totalorder %s147, 1
        %s151 = scalar_select %p150, %s147, 1
        %s152 = smul.addr %s149, 2
        %s153 = sadd.s32 %s151, %s152
        %s154 = smul.addr %s153, 4
        %s155 = scalar_lea.vmem %s0, %s154
        %s156 = smul.u32 2, %s17
      $region28: #{up_forward.3} parent=23 // pred_fallthru
        _
    $region24: #{up_forward.3} parent=5 // pred_fallthru
      _
    %p157 = scmp.le.s32.totalorder 1, %s9
    %p158 = scmp.lt.s32.totalorder %s9, 3
    %p159 = pnand %p157, %p158
    %p160 = pneg %p159
    // Predicated region
    $region29: #{up_forward.3} parent=5 // pred_check
      _
    $region30: #{up_forward.3} parent=5 // pred_check_branch
      %162 = sbr.rel (%p159) target = $region32
    $region31: #{up_forward.3} parent=5 // pred_region
      %s163 = ssub.s32 %s9, 1
      %s164 = smul.u32 2, %s19
      %p165 = scmp.lt.s32.totalorder %s18, 1
      %s166 = scalar_select %p165, %s18, 1
      %p167 = scmp.lt.s32.totalorder %s164, 1
      %s168 = scalar_select %p167, %s164, 1
      %s169 = smul.addr %s166, 2
      %s170 = sadd.s32 %s168, %s169
      %s171 = smul.addr %s170, 4
      %s172 = scalar_lea.vmem %s0, %s171
      %p173 = pneg %p49
      %p174 = pneg %p46
      %p175 = pneg %p70
      %p176 = pneg %p67
      %p177 = pneg %p91
      %p178 = pneg %p88
      %p179 = pneg %p119
      %p180 = pneg %p116
      %s181 = smul.u32 2, %s19
      %p182 = scmp.lt.s32.totalorder %s18, 1
      %s183 = scalar_select %p182, %s18, 1
      %p184 = scmp.lt.s32.totalorder %s181, 1
      %s185 = scalar_select %p184, %s181, 1
      %s186 = smul.addr %s183, 8
      %s187 = sadd.s32 %s185, %s186
      %s188 = smul.addr %s187, 8
      %s189 = scalar_lea.vmem %s3, %s188
      %s190 = smul.u32 2, %s19
      %p191 = scmp.lt.s32.totalorder %s18, 1
      %s192 = scalar_select %p191, %s18, 1
      %p193 = scmp.lt.s32.totalorder %s190, 1
      %s194 = scalar_select %p193, %s190, 1
      %s195 = smul.addr %s192, 2
      %s196 = sadd.s32 %s194, %s195
      %s197 = smul.addr %s196, 4
      %s198 = scalar_lea.vmem %s0, %s197
      %s199 = smul.u32 2, %s19
      %s200 = smul.u32 2, %s19
      %p201 = scmp.lt.s32.totalorder %s18, 1
      %s202 = scalar_select %p201, %s18, 1
      %p203 = scmp.lt.s32.totalorder %s200, 1
      %s204 = scalar_select %p203, %s200, 1
      %s205 = smul.addr %s202, 8
      %s206 = sadd.s32 %s204, %s205
      %s207 = smul.addr %s206, 8
      %s208 = scalar_lea.vmem %s3, %s207
      %s209 = smul.u32 2, %s19
      %v210 = vld [vmem:[%s1] sm:$0xff]
      %v211 = vld [vmem:[%s1 + $0x8] sm:$0xff]
      %v212 = vld [vmem:[%s1 + $0x10] sm:$0xff]
      %v213 = vld [vmem:[%s1 + $0x18] sm:$0xff]
      %v214 = vld [vmem:[%s198] sm:$0xff]
      %v215 = vld [vmem:[%s2] sm:$0xff]
      %v216 = vld [vmem:[%s2 + $0x8] sm:$0xff]
      %v217 = vld [vmem:[%s2 + $0x10] sm:$0xff]
      %v218 = vld [vmem:[%s2 + $0x18] sm:$0xff]
      %220 = vset.pattern.permute.xlu0 0
      %221 = vperm.xlu0 %220, %v215
      %v222 = vpop.permute.xlu0 %221
      %225 = vset.pattern.permute.xlu0 0
      %226 = vperm.xlu0 %225, %v216
      %v227 = vpop.permute.xlu0 %226
      %230 = vset.pattern.permute.xlu0 0
      %231 = vperm.xlu0 %230, %v217
      %v232 = vpop.permute.xlu0 %231
      %235 = vset.pattern.permute.xlu0 0
      %236 = vperm.xlu0 %235, %v218
      %v237 = vpop.permute.xlu0 %236
      %v240 = vcombine.high %v214, %v214
      %vm241 = vcmask 31744
      %v243 = vsel %vm241, %v210, 0
      %v246 = vsel %vm241, %v211, 0
      %v249 = vsel %vm241, %v212, 0
      %v252 = vsel %vm241, %v213, 0
      %vm254 = vcmask 1043456
      %v255 = vsel %vm254, %v214, 0
      %v257 = vsel %vm254, %v240, 0
      %259 = vmatprep.subr.mxu0 %v257
      %260 = vmatpush1.msra.mxu0 %v255
      %261 = vmatprep.subr.mxu0 0.0
      %262 = vmatpush1.msra.mxu0 0.0
      %263 = vmatprep.subr.mxu0 0.0
      %264 = vmatpush1.msra.mxu0 0.0
      %265 = vmatprep.subr.mxu0 0.0
      %266 = vmatpush1.msra.mxu0 0.0
      %267 = vmatprep.subr.mxu0 0.0
      %268 = vmatpush1.msra.mxu0 0.0
      %269 = vmatprep.subr.mxu0 0.0
      %270 = vmatpush1.msra.mxu0 0.0
      %271 = vmatprep.subr.mxu0 0.0
      %272 = vmatpush1.msra.mxu0 0.0
      %273 = vmatprep.subr.mxu0 0.0
      %274 = vmatpush1.msra.mxu0 0.0
      %275 = vmatprep.subr.mxu0 0.0
      %276 = vmatpush1.msra.mxu0 0.0
      %277 = vmatprep.subr.mxu0 0.0
      %278 = vmatpush1.msra.mxu0 0.0
      %279 = vmatprep.subr.mxu0 0.0
      %280 = vmatpush1.msra.mxu0 0.0
      %281 = vmatprep.subr.mxu0 0.0
      %282 = vmatpush1.msra.mxu0 0.0
      %283 = vmatprep.subr.mxu0 0.0
      %284 = vmatpush1.msra.mxu0 0.0
      %285 = vmatprep.subr.mxu0 0.0
      %286 = vmatpush1.msra.mxu0 0.0
      %287 = vmatprep.subr.mxu0 0.0
      %288 = vmatpush1.msra.mxu0 0.0
      %289 = vmatprep.subr.mxu0 0.0
      %290 = vmatpush1.msra.mxu0 0.0
      %291 = vmatprep.subr.mxu0 0.0
      %292 = vmatpush1.msra.mxu0 0.0
      %293 = vmatprep.subr.mxu0 0.0
      %294 = vmatpush1.msra.mxu0 0.0
      %295 = vmatprep.subr.mxu0 0.0
      %296 = vmatpush1.msra.mxu0 0.0
      %297 = vmatprep.subr.mxu0 0.0
      %298 = vmatpush1.msra.mxu0 0.0
      %299 = vmatprep.subr.mxu0 0.0
      %300 = vmatpush1.msra.mxu0 0.0
      %301 = vmatprep.subr.mxu0 0.0
      %302 = vmatpush1.msra.mxu0 0.0
      %303 = vmatprep.subr.mxu0 0.0
      %304 = vmatpush1.msra.mxu0 0.0
      %305 = vmatprep.subr.mxu0 0.0
      %306 = vmatpush1.msra.mxu0 0.0
      %307 = vmatprep.subr.mxu0 0.0
      %308 = vmatpush1.msra.mxu0 0.0
      %309 = vmatprep.subr.mxu0 0.0
      %310 = vmatpush1.msra.mxu0 0.0
      %311 = vmatprep.subr.mxu0 0.0
      %312 = vmatpush1.msra.mxu0 0.0
      %313 = vmatprep.subr.mxu0 0.0
      %314 = vmatpush1.msra.mxu0 0.0
      %315 = vmatprep.subr.mxu0 0.0
      %316 = vmatpush1.msra.mxu0 0.0
      %317 = vmatprep.subr.mxu0 0.0
      %318 = vmatpush1.msra.mxu0 0.0
      %319 = vmatprep.subr.mxu0 0.0
      %320 = vmatpush1.msra.mxu0 0.0
      %321 = vmatprep.subr.mxu0 0.0
      %322 = vmatpush1.msra.mxu0 0.0
      %323 = vmatprep.mubr.f32.mxu0 0.0
      %324 = vmatmul.mubr.f32.gmra.mrb[0].mxu0 %v243
      %v325 = vpop.f32.mrb[0].mxu0
      %v326 = vadd.f32 %v222, %v325
      %v327 = vpop.f32.mrb[0].mxu0
      %v328 = vadd.f32 %v222, %v327
      %329 = vmatprep.mubr.f32.mxu0 0.0
      %330 = vmatmul.mubr.f32.gmra.mrb[0].mxu0 %v246
      %v331 = vpop.f32.mrb[0].mxu0
      %v332 = vadd.f32 %v227, %v331
      %v333 = vpop.f32.mrb[0].mxu0
      %v334 = vadd.f32 %v227, %v333
      %335 = vmatprep.mubr.f32.mxu0 0.0
      %336 = vmatmul.mubr.f32.gmra.mrb[0].mxu0 %v249
      %v337 = vpop.f32.mrb[0].mxu0
      %v338 = vadd.f32 %v232, %v337
      %v339 = vpop.f32.mrb[0].mxu0
      %v340 = vadd.f32 %v232, %v339
      %341 = vmatprep.mubr.f32.mxu0 0.0
      %342 = vmatmul.mubr.f32.gmra.mrb[0].mxu0 %v252
      %v343 = vpop.f32.mrb[0].mxu0
      %v344 = vadd.f32 %v237, %v343
      %v345 = vpop.f32.mrb[0].mxu0
      %v346 = vadd.f32 %v237, %v345
      %347 = vdwg.mxu0
      %vm348 = vcmp.ge.f32.partialorder %v326, 0.0
      %vm349 = vcmp.ge.f32.partialorder %v328, 0.0
      %vm350 = vcmp.ge.f32.partialorder %v332, 0.0
      %vm351 = vcmp.ge.f32.partialorder %v334, 0.0
      %vm352 = vcmp.ge.f32.partialorder %v338, 0.0
      %vm353 = vcmp.ge.f32.partialorder %v340, 0.0
      %vm354 = vcmp.ge.f32.partialorder %v344, 0.0
      %vm355 = vcmp.ge.f32.partialorder %v346, 0.0
      %v356 = vmul.f32 %v326, 0.1
      %v357 = vmul.f32 %v328, 0.1
      %v358 = vmul.f32 %v332, 0.1
      %v359 = vmul.f32 %v334, 0.1
      %v360 = vmul.f32 %v338, 0.1
      %v361 = vmul.f32 %v340, 0.1
      %v362 = vmul.f32 %v344, 0.1
      %v363 = vmul.f32 %v346, 0.1
      %v364 = vsel %vm348, %v326, %v356
      %v365 = vsel %vm349, %v328, %v357
      %v366 = vsel %vm350, %v332, %v358
      %v367 = vsel %vm351, %v334, %v359
      %v368 = vsel %vm352, %v338, %v360
      %v369 = vsel %vm353, %v340, %v361
      %v370 = vsel %vm354, %v344, %v362
      %v371 = vsel %vm355, %v346, %v363
      %372 = vst [vmem:[%s208] sm:$0xff] %v364
      %373 = vst [vmem:[%s208 + $0x8] sm:$0xff] %v365
      %374 = vst [vmem:[%s208 + $0x10] sm:$0xff] %v366
      %375 = vst [vmem:[%s208 + $0x18] sm:$0xff] %v367
      %376 = vst [vmem:[%s208 + $0x20] sm:$0xff] %v368
      %377 = vst [vmem:[%s208 + $0x28] sm:$0xff] %v369
      %378 = vst [vmem:[%s208 + $0x30] sm:$0xff] %v370
      %379 = vst [vmem:[%s208 + $0x38] sm:$0xff] %v371
      %s380 = smul.u32 2, %s19
      %p381 = scmp.lt.s32.totalorder %s18, 1
      %s382 = scalar_select %p381, %s18, 1
      %p383 = scmp.lt.s32.totalorder %s380, 1
      %s384 = scalar_select %p383, %s380, 1
      %s385 = smul.addr %s382, 8
      %s386 = sadd.s32 %s384, %s385
      %s387 = smul.addr %s386, 8
      %s388 = scalar_lea.vmem %s3, %s387
      // Predicated region
      $region33: #{up_forward.3} parent=31 // pred_check
        %p389 = pneg %p116
      $region34: #{up_forward.3} parent=31 // pred_check_branch
        %391 = sbr.rel (%p389) target = $region36
      $region35: #{up_forward.3} parent=31 // pred_region
        %s392 = smul.u32 2, %s19
      $region36: #{up_forward.3} parent=31 // pred_fallthru
        _
    $region32: #{up_forward.3} parent=5 // pred_fallthru
      _
    %p393 = scmp.le.s32.totalorder 2, %s9
    // Predicated region
    $region37: #{up_forward.3} parent=5 // pred_check
      %p394 = pneg %p393
    $region38: #{up_forward.3} parent=5 // pred_check_branch
      %396 = sbr.rel (%p394) target = $region40
    $region39: #{up_forward.3} parent=5 // pred_region
      %s397 = ssub.s32 %s9, 2
      // Predicated region
      $region41: #{up_forward.3} parent=39 // pred_check
        %p398 = pneg %p122
      $region42: #{up_forward.3} parent=39 // pred_check_branch
        %400 = sbr.rel (%p398) target = $region44
      $region43: #{up_forward.3} parent=39 // pred_region
        %s401 = smul.u32 2, %s21
        %p402 = scmp.lt.s32.totalorder %s20, 1
        %s403 = scalar_select %p402, %s20, 1
        %p404 = scmp.lt.s32.totalorder %s401, 1
        %s405 = scalar_select %p404, %s401, 1
        %s406 = smul.addr %s403, 8
        %s407 = sadd.s32 %s405, %s406
        %s408 = smul.addr %s407, 8
        %s409 = scalar_lea.vmem %s3, %s408
      $region44: #{up_forward.3} parent=39 // pred_fallthru
        _
    $region40: #{up_forward.3} parent=5 // pred_fallthru
      _
  $region6: #{up_forward.3} parent=0 // loop_footer
    %s13 = sadd.s32 1, %s9
  $region7: #{up_forward.3} parent=0 // loop_footer_branch
    %8 = sbr.rel target = $region3
  $region8: #{up_forward.3} parent=0 // loop_exit
    _

</llo_original>
